<compile_context>
chip_gen: v7x
topology: tpu7x:2x2x1
jax: 0.10.0
libtpu: 0.0.40
codegen_flags: <defaults>
</compile_context>

<pallas_src>
import jax
import jax.numpy as jnp
from jax.experimental import pallas as pl
from jax.experimental.pallas import tpu as pltpu


# ----------------------------------------------------------------------------
# Faithful port of the reference module's forward pass.
# ----------------------------------------------------------------------------
class TransformerDecoder:
    """JAX/Pallas equivalent of the (empty) PyTorch TransformerDecoder."""

    def __init__(self):
        # Reference __init__ registers no parameters / submodules.
        pass

    def forward(self):
        # Reference forward is `pass` -> returns None, no computation.
        return None

    __call__ = forward


# ----------------------------------------------------------------------------
# Identity-copy Pallas kernels (runnable self-check of the Pallas/TPU path).
# ----------------------------------------------------------------------------
def _copy_kernel(x_ref, o_ref):
    o_ref[...] = x_ref[...]


def _packed_sublanes(dtype) -> int:
    """Row granularity so sub-32-bit dtypes fill packed sublanes (8/16/32)."""
    bits = jnp.dtype(dtype).itemsize * 8
    return max(8, (32 // max(bits, 1)) * 8)


def _tpu_vmem_capacity_bytes() -> int:
    """Physical VMEM per core (v5e/v6e: 128 MiB, v7x: 64 MiB) with fallback."""
    try:
        cap = int(pltpu.get_tpu_info().vmem_capacity_bytes)
        if cap > 0:
            return cap
    except Exception:
        pass
    # Conservative: assume v7x-sized VMEM so the derived budget never overshoots.
    return 64 * 1024 * 1024


def pallas_identity_single_block(x: jax.Array) -> jax.Array:
    """Identity copy of a small array as one un-gridded VMEM block.

    Only used for arrays that trivially fit in VMEM (the dispatcher guards the
    size); a grid would be pure pipeline/DMA setup overhead here.
    """
    return pl.pallas_call(
        _copy_kernel,
        out_shape=jax.ShapeDtypeStruct(x.shape, x.dtype),
        in_specs=[pl.BlockSpec(memory_space=pltpu.MemorySpace.VMEM)],
        out_specs=pl.BlockSpec(memory_space=pltpu.MemorySpace.VMEM),
    )(x)


def pallas_identity_tiled_2d(
    x: jax.Array,
    *,
    tile_budget_bytes: int | None = None,
    vmem_limit_bytes: int | None = None,
) -> jax.Array:
    """Identity copy of a 2-D array with large, lane-dense tiles.

    Tiles are sized from the chip's VMEM capacity: the 4 live tiles
    (input + output, each double-buffered) share ~3/8 of physical VMEM
    (v7x -> ~24 MiB, v5e/v6e -> ~48 MiB).  A cdiv grid with a masked partial
    final block handles ragged row/col counts, and the grid is forced to at
    least 2 parallel steps so both v7x TensorCores get work.
    """
    rows, cols = x.shape
    itemsize = jnp.dtype(x.dtype).itemsize
    sub = _packed_sublanes(x.dtype)

    vmem_cap = _tpu_vmem_capacity_bytes()
    if tile_budget_bytes is None:
        # 2 operands x 2 pipeline buffers = 4 live tiles; keep them in ~3/8 of
        # physical VMEM so there is headroom for internal scratch.
        tile_budget_bytes = (vmem_cap * 3) // 8
    if vmem_limit_bytes is None:
        vmem_limit_bytes = vmem_cap // 2

    # Lane-dim tiling: full width unless the slab is very wide, in which case
    # block lanes in 2048-lane chunks (multiple of 128) instead of letting the
    # row tile collapse to the packed-sublane minimum.
    if cols % 128 == 0 and cols >= 4096:
        block_cols = 2048
    else:
        block_cols = cols

    # Row-dim tiling: as many rows as the budget allows (no artificial cap),
    # rounded to the packed-sublane multiple; clamp to the (rounded) row count.
    max_rows_budget = max(sub, tile_budget_bytes // (4 * block_cols * itemsize))
    rows_rounded = ((rows + sub - 1) // sub) * sub
    block_rows = max(sub, (min(max_rows_budget, rows_rounded) // sub) * sub)

    n_row_blocks = pl.cdiv(rows, block_rows)
    n_col_blocks = pl.cdiv(cols, block_cols)

    # v7x megacore: make sure there are >= 2 parallel grid steps (free on
    # single-TC v5e/v6e).  Split the rows roughly in half when a single block
    # would cover everything.
    if n_row_blocks * n_col_blocks < 2 and rows >= 2 * sub:
        half = -(-rows // 2)
        block_rows = ((half + sub - 1) // sub) * sub
        n_row_blocks = pl.cdiv(rows, block_rows)

    grid = (n_row_blocks, n_col_blocks)
    return pl.pallas_call(
        _copy_kernel,
        out_shape=jax.ShapeDtypeStruct((rows, cols), x.dtype),
        grid=grid,
        in_specs=[pl.BlockSpec((block_rows, block_cols), lambda i, j: (i, j))],
        out_specs=pl.BlockSpec((block_rows, block_cols), lambda i, j: (i, j)),
        compiler_params=pltpu.CompilerParams(
            dimension_semantics=("parallel", "parallel"),
            vmem_limit_bytes=int(vmem_limit_bytes),
        ),
    )(x)


_SMALL_BYTES = 2 * 1024 * 1024   # dispatch threshold for the un-gridded path
_MAX_LANE_WIDTH = 2048           # lane-dense slab width cap (multiple of 128)


def pallas_identity(x: jax.Array) -> jax.Array:
    """Size-guarded dispatcher: small -> single VMEM block, large -> tiled copy.

    Large arrays are flattened to a lane-dense 2-D slab (cols a multiple of
    128, <= 2048) so the output stores are never masked partial `vst`s; element
    counts that are not a multiple of 128 are padded and the pad sliced off
    afterwards (wrapper-side layout plumbing only).
    """
    nbytes = x.size * jnp.dtype(x.dtype).itemsize
    if nbytes <= _SMALL_BYTES:
        return pallas_identity_single_block(x)

    flat = x.reshape(-1)
    n = flat.shape[0]
    pad = (-n) % 128
    if pad:
        flat = jnp.pad(flat, (0, pad))
    n_padded = n + pad

    # Largest lane width <= _MAX_LANE_WIDTH (multiple of 128) dividing n_padded.
    cols = min(_MAX_LANE_WIDTH, n_padded)
    cols -= cols % 128
    while n_padded % cols != 0:
        cols -= 128
    rows = n_padded // cols

    y2d = pallas_identity_tiled_2d(flat.reshape(rows, cols))
    y = y2d.reshape(-1)
    if pad:
        y = y[:n]
    return y.reshape(x.shape)


if __name__ == "__main__":
    key = jax.random.PRNGKey(0)
    k1, k2, k3 = jax.random.split(key, 3)

    # 1) Faithful forward pass of the reference module (no-op, returns None).
    decoder = TransformerDecoder()
    assert decoder() is None, "Reference forward() returns None"

    # 2) Small rank-4 input -> single un-gridded VMEM block (no grid overhead).
    x_small = jax.random.normal(k1, (2, 4, 16, 128), dtype=jnp.float32)
    y_small = pallas_identity(x_small)
    jax.block_until_ready(y_small)
    assert y_small.shape == x_small.shape and y_small.dtype == x_small.dtype
    assert bool(jnp.array_equal(y_small, x_small)), "Single-block identity mismatch"

    # 3) Larger input (3 MiB) -> flattened to a (384, 2048) lane-dense slab,
    #    copied with a 2-step parallel grid (both v7x TCs busy, budget-sized tiles).
    x_big = jax.random.normal(k2, (2048, 384), dtype=jnp.float32)
    y_big = pallas_identity(x_big)
    jax.block_until_ready(y_big)
    assert y_big.shape == x_big.shape and y_big.dtype == x_big.dtype
    assert bool(jnp.array_equal(y_big, x_big)), "Tiled identity mismatch"

    # 4) Awkward element count (999*1111 not a multiple of 128) -> padded
    #    lane-dense slab; the ragged tail block is handled by the cdiv grid's
    #    masked writeback, so no rows are dropped.
    x_rag = jax.random.normal(k3, (999, 1111), dtype=jnp.float32)
    y_rag = pallas_identity(x_rag)
    jax.block_until_ready(y_rag)
    assert y_rag.shape == x_rag.shape and y_rag.dtype == x_rag.dtype
    assert bool(jnp.array_equal(y_rag, x_rag)), "Ragged identity mismatch"

    print("KERNEL_OK")
</pallas_src>

<mosaic_0001>
module attributes {stable_mosaic.version = 11 : i64} {
  func.func @_copy_kernel(%arg0: memref<2x4x16x128xf32, #tpu.memory_space<vmem>>, %arg1: memref<2x4x16x128xf32, #tpu.memory_space<vmem>>) attributes {dimension_semantics = [], scalar_prefetch = 0 : i64, scratch_operands = 0 : i64, tpu.core_type = #tpu.core_type<tc>} {
    %c0 = arith.constant 0 : index
    %c0_0 = arith.constant 0 : index
    %c0_1 = arith.constant 0 : index
    %c0_2 = arith.constant 0 : index
    %0 = vector.load %arg0[%c0, %c0_0, %c0_1, %c0_2] : memref<2x4x16x128xf32, #tpu.memory_space<vmem>>, vector<2x4x16x128xf32>
    %c0_3 = arith.constant 0 : index
    %c0_4 = arith.constant 0 : index
    %c0_5 = arith.constant 0 : index
    %c0_6 = arith.constant 0 : index
    %1 = vector.load %arg1[%c0_3, %c0_4, %c0_5, %c0_6] : memref<2x4x16x128xf32, #tpu.memory_space<vmem>>, vector<2x4x16x128xf32>
    tpu.vector_store %arg1[%c0_3, %c0_4, %c0_5, %c0_6], %0 {strides = array<i32>} : memref<2x4x16x128xf32, #tpu.memory_space<vmem>>, vector<2x4x16x128xf32>,
    return
  }
}

</mosaic_0001>

<llo_original>
// kernel: tpu_custom_call.1
$region0: #{tpu_custom_call.1}
  #allocation0 [shape = 'u32[]', space=smem, size = 0x4, offset = 0x4, fixed_abs, tag = 'smem constant byte address 0x4 - core index']
  #allocation1 [shape = 'u32[144,128]{1,0:T(1,128)}', space=vmem, size = 0x12000, scoped, tag = 'internal scratch']
  %s0 = inlined_call_operand.hbm [shape: f32[2,4,16,128], index: 0, kind: input, shape index: {}]
  %s1 = inlined_call_operand.hbm [shape: f32[2,4,16,128], index: 1, kind: output, shape index: {}]
  %s2 = sld [smem:[#allocation0]]
  $region18: #{tpu_custom_call.1} parent=0
    _
  %s4 = ssub.s32 1, %s2
  %s5 = scalar_select 0, %s4, %s2
  $region1: #{tpu_custom_call.1} parent=0
    #allocation2 [shape = 'u8[65536]{0}', space=vmem, size = 0x10000, scoped, tag = 'input window, operand 0, single buffered']
    #allocation3 [shape = 's32[1]{0}', space=sflag, size = 0x4, scoped, tag = 'scoped memory for tpu_custom_call.1']
    #allocation4 [shape = 's32[1]{0}', space=sflag, size = 0x4, scoped, tag = 'scoped memory for tpu_custom_call.1']
    #allocation5 [shape = 'u8[65536]{0}', space=vmem, size = 0x10000, scoped, tag = 'output window, operand 0, single buffered']
    %6 = vsyncpa [#allocation3], 0
    %7 = vsyncpa [#allocation4], 0
    // Predicated region
    $region2: #{tpu_custom_call.1} parent=1 // pred_check
      _
    $region3: #{tpu_custom_call.1} parent=1 // pred_check_branch
      %9 = sbr.rel (0) target = $region5
    $region4: #{tpu_custom_call.1} parent=1 // pred_region
      %s11 = ssub.s32 2048, 2048
      %12 = vsyncadd [#allocation3], %s11
      %s13 = sshll.u32 [#allocation2], 4
      %s14 = int_to_ptr.vmem [resolvable:$true] %s13
      %19 = dma.hbm_to_vmem [thread:$0]  %s0, 2048, %s14, [#allocation3], 128, 128, 8
    $region5: #{tpu_custom_call.1} parent=1 // pred_fallthru
      _
    // Predicated region
    $region6: #{tpu_custom_call.1} parent=1 // pred_check
      _
    $region7: #{tpu_custom_call.1} parent=1 // pred_check_branch
      %21 = sbr.rel (0) target = $region9
    $region8: #{tpu_custom_call.1} parent=1 // pred_region
      %22 = dma.done [#allocation3], 2048
    $region9: #{tpu_custom_call.1} parent=1 // pred_fallthru
      _
    %v23 = vld [vmem:[#allocation2] sm:$0xff]
    %v24 = vld [vmem:[#allocation2 + $0x8] sm:$0xff]
    %v25 = vld [vmem:[#allocation2 + $0x10] sm:$0xff]
    %v26 = vld [vmem:[#allocation2 + $0x18] sm:$0xff]
    %v27 = vld [vmem:[#allocation2 + $0x20] sm:$0xff]
    %v28 = vld [vmem:[#allocation2 + $0x28] sm:$0xff]
    %v29 = vld [vmem:[#allocation2 + $0x30] sm:$0xff]
    %v30 = vld [vmem:[#allocation2 + $0x38] sm:$0xff]
    %v31 = vld [vmem:[#allocation2 + $0x40] sm:$0xff]
    %v32 = vld [vmem:[#allocation2 + $0x48] sm:$0xff]
    %v33 = vld [vmem:[#allocation2 + $0x50] sm:$0xff]
    %v34 = vld [vmem:[#allocation2 + $0x58] sm:$0xff]
    %v35 = vld [vmem:[#allocation2 + $0x60] sm:$0xff]
    %v36 = vld [vmem:[#allocation2 + $0x68] sm:$0xff]
    %v37 = vld [vmem:[#allocation2 + $0x70] sm:$0xff]
    %v38 = vld [vmem:[#allocation2 + $0x78] sm:$0xff]
    %39 = vst [vmem:[#allocation5] sm:$0xff] %v23
    %40 = vst [vmem:[#allocation5 + $0x8] sm:$0xff] %v24
    %41 = vst [vmem:[#allocation5 + $0x10] sm:$0xff] %v25
    %42 = vst [vmem:[#allocation5 + $0x18] sm:$0xff] %v26
    %43 = vst [vmem:[#allocation5 + $0x20] sm:$0xff] %v27
    %44 = vst [vmem:[#allocation5 + $0x28] sm:$0xff] %v28
    %45 = vst [vmem:[#allocation5 + $0x30] sm:$0xff] %v29
    %46 = vst [vmem:[#allocation5 + $0x38] sm:$0xff] %v30
    %47 = vst [vmem:[#allocation5 + $0x40] sm:$0xff] %v31
    %48 = vst [vmem:[#allocation5 + $0x48] sm:$0xff] %v32
    %49 = vst [vmem:[#allocation5 + $0x50] sm:$0xff] %v33
    %50 = vst [vmem:[#allocation5 + $0x58] sm:$0xff] %v34
    %51 = vst [vmem:[#allocation5 + $0x60] sm:$0xff] %v35
    %52 = vst [vmem:[#allocation5 + $0x68] sm:$0xff] %v36
    %53 = vst [vmem:[#allocation5 + $0x70] sm:$0xff] %v37
    %54 = vst [vmem:[#allocation5 + $0x78] sm:$0xff] %v38
    // Predicated region
    $region10: #{tpu_custom_call.1} parent=1 // pred_check
      _
    $region11: #{tpu_custom_call.1} parent=1 // pred_check_branch
      %56 = sbr.rel (0) target = $region13
    $region12: #{tpu_custom_call.1} parent=1 // pred_region
      %s58 = ssub.s32 2048, 2048
      %59 = vsyncadd [#allocation4], %s58
      %s60 = sshll.u32 [#allocation5], 4
      %s61 = int_to_ptr.vmem [resolvable:$true] %s60
      %66 = dma.vmem_to_hbm [thread:$0]  %s61, 2048, %s1, [#allocation4], 128, 128, 8
    $region13: #{tpu_custom_call.1} parent=1 // pred_fallthru
      _
    // Predicated region
    $region14: #{tpu_custom_call.1} parent=1 // pred_check
      _
    $region15: #{tpu_custom_call.1} parent=1 // pred_check_branch
      %68 = sbr.rel (0) target = $region17
    $region16: #{tpu_custom_call.1} parent=1 // pred_region
      %69 = dma.done [#allocation4], 2048
    $region17: #{tpu_custom_call.1} parent=1 // pred_fallthru
      _
    %70 = vsyncpa [#allocation3], 1
    %71 = vsyncpa [#allocation4], 1

</llo_original>
